<compile_context>
chip_gen: v6e
topology: v6e:2x2x1
jax: 0.10.0
libtpu: 0.0.40
codegen_flags: <defaults>
</compile_context>

<pallas_src>
import jax
import jax.numpy as jnp
from jax.experimental import pallas as pl
from jax.experimental.pallas import tpu as pltpu

EPS = 1e-5  # nn.LayerNorm default


def _round_up(a: int, b: int) -> int:
    return ((a + b - 1) // b) * b


def _prenorm_linear_kernel(x_ref, g_ref, b_ref, w_ref, wb_ref, o_ref, y_ref):
    # x_ref : (TM, D)    rows to normalize (resident across the Dout axis)
    # g_ref : (1, D)     LayerNorm weight (gamma), f32
    # b_ref : (1, D)     LayerNorm bias   (beta),  f32
    # w_ref : (D, TN)    Linear weight tile, bf16, laid out for  y @ W
    # wb_ref: (1, TN)    Linear bias tile, f32
    # o_ref : (TM, TN)   output tile
    # y_ref : (TM, D)    bf16 scratch holding the normalized rows
    j = pl.program_id(1)

    # --- LayerNorm over the last dim, computed once per row tile (j == 0).
    @pl.when(j == 0)
    def _():
        x = x_ref[...].astype(jnp.float32)
        gamma = g_ref[...].astype(jnp.float32)
        beta = b_ref[...].astype(jnp.float32)

        d = x.shape[-1]
        inv_d = jnp.float32(1.0 / d)
        # One-pass moments: sum(x) and sum(x*x) are independent reductions.
        mean = jnp.sum(x, axis=-1, keepdims=True) * inv_d
        mean_sq = jnp.sum(x * x, axis=-1, keepdims=True) * inv_d
        var = jnp.maximum(mean_sq - mean * mean, 0.0)
        inv = jax.lax.rsqrt(var + EPS)
        y_ref[...] = ((x - mean) * inv * gamma + beta).astype(y_ref.dtype)

    # --- fn == Linear: y @ W_tile + b_tile on the MXU (bf16 in, f32 acc).
    out = jnp.dot(y_ref[...], w_ref[...], preferred_element_type=jnp.float32)
    out = out + wb_ref[...].astype(jnp.float32)
    o_ref[...] = out.astype(o_ref.dtype)


def prenorm_linear(x, gamma, beta, w, wb, *, tm=256, tn=512):
    """fn(LayerNorm(x)) with fn = Linear, fused in one Pallas kernel.

    x     : (B, N, D)
    gamma : (D,)       LayerNorm weight
    beta  : (D,)       LayerNorm bias
    w     : (D, Dout)  Linear weight, laid out for  y @ w
    wb    : (Dout,)    Linear bias
    tm    : row tile (rows per grid step); clamped / padded so any B*N works.
    tn    : Dout tile (must be a multiple of 128 when Dout > tn).
    """
    B, N, D = x.shape
    Dout = w.shape[1]
    M = B * N

    # Row tiling: clamp for small inputs, pad so the grid divides evenly.
    # Padded zero rows normalize to `beta` (finite) and are sliced off below.
    tm_eff = min(tm, _round_up(M, 8))
    Mp = _round_up(M, tm_eff)

    # Dout tiling: single full-width tile when it fits, else tiles of `tn`
    # (multiple of 128) with zero-padded weight columns (sliced off below).
    if Dout <= tn:
        tn_eff = Dout
        Dp = Dout
    else:
        assert tn % 128 == 0, "tn must be a multiple of 128 when tiling Dout"
        tn_eff = tn
        Dp = _round_up(Dout, tn_eff)

    x2 = x.reshape(M, D)
    if Mp != M:
        x2 = jnp.pad(x2, ((0, Mp - M), (0, 0)))

    g2 = gamma.reshape(1, D).astype(jnp.float32)
    b2 = beta.reshape(1, D).astype(jnp.float32)
    w_bf = w.astype(jnp.bfloat16)          # bf16-native MXU; half VMEM footprint
    wb2 = wb.reshape(1, Dout).astype(jnp.float32)
    if Dp != Dout:
        w_bf = jnp.pad(w_bf, ((0, 0), (0, Dp - Dout)))
        wb2 = jnp.pad(wb2, ((0, 0), (0, Dp - Dout)))

    out2 = pl.pallas_call(
        _prenorm_linear_kernel,
        out_shape=jax.ShapeDtypeStruct((Mp, Dp), x.dtype),
        grid_spec=pltpu.PrefetchScalarGridSpec(
            num_scalar_prefetch=0,
            grid=(Mp // tm_eff, Dp // tn_eff),
            in_specs=[
                pl.BlockSpec((tm_eff, D), lambda i, j: (i, 0)),   # x rows
                pl.BlockSpec((1, D), lambda i, j: (0, 0)),        # gamma
                pl.BlockSpec((1, D), lambda i, j: (0, 0)),        # beta
                pl.BlockSpec((D, tn_eff), lambda i, j: (0, j)),   # W tile
                pl.BlockSpec((1, tn_eff), lambda i, j: (0, j)),   # linear bias
            ],
            out_specs=pl.BlockSpec((tm_eff, tn_eff), lambda i, j: (i, j)),
            scratch_shapes=[pltpu.VMEM((tm_eff, D), jnp.bfloat16)],
        ),
        compiler_params=pltpu.CompilerParams(
            # Row axis shards across TensorCores; the Dout axis carries the
            # normalized-activation scratch, so it must stay "arbitrary".
            dimension_semantics=("parallel", "arbitrary"),
            vmem_limit_bytes=48 * 1024 * 1024,
        ),
    )(x2, g2, b2, w_bf, wb2)

    if Mp != M or Dp != Dout:
        out2 = out2[:M, :Dout]
    return out2.reshape(B, N, Dout)


def prenorm_linear_ref(x, gamma, beta, w, wb):
    """Pure-JAX f32 reference (mirrors torch LayerNorm + Linear)."""
    xf = x.astype(jnp.float32)
    mean = jnp.mean(xf, axis=-1, keepdims=True)
    var = jnp.mean((xf - mean) ** 2, axis=-1, keepdims=True)
    y = (xf - mean) / jnp.sqrt(var + EPS) * gamma + beta
    return (y @ w + wb).astype(x.dtype)


def _check(B, N, D, Dout, key, tm=256, tn=512, atol=3e-2, rtol=3e-2):
    kx, kg, kb, kw, kwb = jax.random.split(key, 5)
    x = jax.random.normal(kx, (B, N, D), dtype=jnp.float32)
    gamma = jnp.ones((D,), jnp.float32) + 0.1 * jax.random.normal(kg, (D,))
    beta = 0.1 * jax.random.normal(kb, (D,))
    w = jax.random.normal(kw, (D, Dout), dtype=jnp.float32) / jnp.sqrt(D)
    wb = 0.1 * jax.random.normal(kwb, (Dout,), dtype=jnp.float32)

    out = jax.block_until_ready(
        prenorm_linear(x, gamma, beta, w, wb, tm=tm, tn=tn))
    ref = prenorm_linear_ref(x, gamma, beta, w, wb)
    assert out.shape == (B, N, Dout)
    # bf16 MXU inputs (f32 accumulation) -> slightly looser tolerance vs f32 ref.
    assert jnp.allclose(out, ref, atol=atol, rtol=rtol), "mismatch vs reference"


if __name__ == "__main__":
    key = jax.random.PRNGKey(0)
    k1, k2, k3 = jax.random.split(key, 3)

    # Small shape consistent with the module (batch=2, seq=8, hidden=32).
    _check(B=2, N=8, D=32, Dout=32, key=k1)

    # Larger shape exercising the big row tile (tm=256) + row-padding path.
    _check(B=4, N=100, D=256, Dout=256, key=k2)

    # Shape exercising the Dout-tiled path (tn=512) + Dout-padding path.
    _check(B=2, N=64, D=256, Dout=640, key=k3, tm=128, tn=512)

    print("KERNEL_OK")
</pallas_src>

<mosaic_0001>
module attributes {stable_mosaic.version = 11 : i64} {
  func.func @_prenorm_linear_kernel(%arg0: i32, %arg1: i32, %arg2: memref<16x32xf32, #tpu.memory_space<vmem>>, %arg3: memref<1x32xf32, #tpu.memory_space<vmem>>, %arg4: memref<1x32xf32, #tpu.memory_space<vmem>>, %arg5: memref<32x32xbf16, #tpu.memory_space<vmem>>, %arg6: memref<1x32xf32, #tpu.memory_space<vmem>>, %arg7: memref<16x32xf32, #tpu.memory_space<vmem>>, %arg8: memref<16x32xbf16, #tpu.memory_space<vmem>>) attributes {dimension_semantics = [#tpu.dimension_semantics<parallel>, #tpu.dimension_semantics<arbitrary>], iteration_bounds = array<i64: 1, 1>, scalar_prefetch = 0 : i64, scratch_operands = 1 : i64, tpu.core_type = #tpu.core_type<tc>, window_params = [{transform_indices = @transform_0, window_bounds = array<i64: 16, 32>}, {pipeline_mode = #tpu.pipeline_mode<synchronous>, transform_indices = @transform_1, window_bounds = array<i64: 1, 32>}, {pipeline_mode = #tpu.pipeline_mode<synchronous>, transform_indices = @transform_2, window_bounds = array<i64: 1, 32>}, {transform_indices = @transform_3, window_bounds = array<i64: 32, 32>}, {transform_indices = @transform_4, window_bounds = array<i64: 1, 32>}, {transform_indices = @transform_5, window_bounds = array<i64: 16, 32>}]} {
    %c0_i32 = arith.constant 0 : i32
    %0 = arith.cmpi eq, %arg1, %c0_i32 : i32
    %1 = arith.extui %0 : i1 to i32
    %c0_i32_0 = arith.constant 0 : i32
    %2 = arith.cmpi ne, %1, %c0_i32_0 : i32
    scf.if %2 {
      %c0_8 = arith.constant 0 : index
      %c0_9 = arith.constant 0 : index
      %10 = vector.load %arg2[%c0_8, %c0_9] : memref<16x32xf32, #tpu.memory_space<vmem>>, vector<16x32xf32>
      %c0_10 = arith.constant 0 : index
      %c0_11 = arith.constant 0 : index
      %11 = vector.load %arg3[%c0_10, %c0_11] : memref<1x32xf32, #tpu.memory_space<vmem>>, vector<1x32xf32>
      %c0_12 = arith.constant 0 : index
      %c0_13 = arith.constant 0 : index
      %12 = vector.load %arg4[%c0_12, %c0_13] : memref<1x32xf32, #tpu.memory_space<vmem>>, vector<1x32xf32>
      %cst_14 = arith.constant dense<0.000000e+00> : vector<16xf32>
      %13 = vector.multi_reduction <add>, %10, %cst_14 [1] : vector<16x32xf32> to vector<16xf32>
      %14 = vector.shape_cast %13 : vector<16xf32> to vector<16x1xf32>
      %cst_15 = arith.constant 3.125000e-02 : f32
      %15 = vector.broadcast %cst_15 : f32 to vector<16x1xf32>
      %16 = arith.mulf %14, %15 : vector<16x1xf32>
      %17 = arith.mulf %10, %10 : vector<16x32xf32>
      %cst_16 = arith.constant dense<0.000000e+00> : vector<16xf32>
      %18 = vector.multi_reduction <add>, %17, %cst_16 [1] : vector<16x32xf32> to vector<16xf32>
      %19 = vector.shape_cast %18 : vector<16xf32> to vector<16x1xf32>
      %cst_17 = arith.constant 3.125000e-02 : f32
      %20 = vector.broadcast %cst_17 : f32 to vector<16x1xf32>
      %21 = arith.mulf %19, %20 : vector<16x1xf32>
      %22 = arith.mulf %16, %16 : vector<16x1xf32>
      %23 = arith.subf %21, %22 : vector<16x1xf32>
      %cst_18 = arith.constant 0.000000e+00 : f32
      %24 = vector.broadcast %cst_18 : f32 to vector<16x1xf32>
      %25 = arith.maximumf %23, %24 : vector<16x1xf32>
      %cst_19 = arith.constant 9.99999974E-6 : f32
      %26 = vector.broadcast %cst_19 : f32 to vector<16x1xf32>
      %27 = arith.addf %25, %26 : vector<16x1xf32>
      %28 = math.rsqrt %27 : vector<16x1xf32>
      %29 = vector.broadcast %16 : vector<16x1xf32> to vector<16x32xf32>
      %30 = arith.subf %10, %29 : vector<16x32xf32>
      %31 = vector.broadcast %28 : vector<16x1xf32> to vector<16x32xf32>
      %32 = arith.mulf %30, %31 : vector<16x32xf32>
      %33 = vector.broadcast %11 : vector<1x32xf32> to vector<16x32xf32>
      %34 = arith.mulf %32, %33 : vector<16x32xf32>
      %35 = vector.broadcast %12 : vector<1x32xf32> to vector<16x32xf32>
      %36 = arith.addf %34, %35 : vector<16x32xf32>
      %37 = arith.truncf %36 : vector<16x32xf32> to vector<16x32xbf16>
      %c0_20 = arith.constant 0 : index
      %c0_21 = arith.constant 0 : index
      %38 = vector.load %arg8[%c0_20, %c0_21] : memref<16x32xbf16, #tpu.memory_space<vmem>>, vector<16x32xbf16>
      tpu.vector_store %arg8[%c0_20, %c0_21], %37 {strides = array<i32>} : memref<16x32xbf16, #tpu.memory_space<vmem>>, vector<16x32xbf16>,
    } else {
    }
    %c0 = arith.constant 0 : index
    %c0_1 = arith.constant 0 : index
    %3 = vector.load %arg8[%c0, %c0_1] : memref<16x32xbf16, #tpu.memory_space<vmem>>, vector<16x32xbf16>
    %c0_2 = arith.constant 0 : index
    %c0_3 = arith.constant 0 : index
    %4 = vector.load %arg5[%c0_2, %c0_3] : memref<32x32xbf16, #tpu.memory_space<vmem>>, vector<32x32xbf16>
    %cst = arith.constant dense<0.000000e+00> : vector<16x32xf32>
    %5 = tpu.matmul %3, %4, %cst {dimension_numbers = #tpu.dot_dimension_numbers<[1], [0], [0], [1], [0, 0, 1, 1], [], []>} : vector<16x32xbf16>, vector<32x32xbf16>, vector<16x32xf32> -> vector<16x32xf32>
    %c0_4 = arith.constant 0 : index
    %c0_5 = arith.constant 0 : index
    %6 = vector.load %arg6[%c0_4, %c0_5] : memref<1x32xf32, #tpu.memory_space<vmem>>, vector<1x32xf32>
    %7 = vector.broadcast %6 : vector<1x32xf32> to vector<16x32xf32>
    %8 = arith.addf %5, %7 : vector<16x32xf32>
    %c0_6 = arith.constant 0 : index
    %c0_7 = arith.constant 0 : index
    %9 = vector.load %arg7[%c0_6, %c0_7] : memref<16x32xf32, #tpu.memory_space<vmem>>, vector<16x32xf32>
    tpu.vector_store %arg7[%c0_6, %c0_7], %8 {strides = array<i32>} : memref<16x32xf32, #tpu.memory_space<vmem>>, vector<16x32xf32>,
    return
  }
  func.func @transform_0(%arg0: i32, %arg1: i32) -> (i32, i32) {
    %c0_i32 = arith.constant 0 : i32
    %c0_i32_0 = arith.constant 0 : i32
    return %arg0, %c0_i32 : i32, i32
  }
  func.func @transform_1(%arg0: i32, %arg1: i32) -> (i32, i32) {
    %c0_i32 = arith.constant 0 : i32
    %c0_i32_0 = arith.constant 0 : i32
    %c0_i32_1 = arith.constant 0 : i32
    return %c0_i32, %c0_i32_0 : i32, i32
  }
  func.func @transform_2(%arg0: i32, %arg1: i32) -> (i32, i32) {
    %c0_i32 = arith.constant 0 : i32
    %c0_i32_0 = arith.constant 0 : i32
    %c0_i32_1 = arith.constant 0 : i32
    return %c0_i32, %c0_i32_0 : i32, i32
  }
  func.func @transform_3(%arg0: i32, %arg1: i32) -> (i32, i32) {
    %c0_i32 = arith.constant 0 : i32
    %c0_i32_0 = arith.constant 0 : i32
    return %c0_i32, %arg1 : i32, i32
  }
  func.func @transform_4(%arg0: i32, %arg1: i32) -> (i32, i32) {
    %c0_i32 = arith.constant 0 : i32
    %c0_i32_0 = arith.constant 0 : i32
    return %c0_i32, %arg1 : i32, i32
  }
  func.func @transform_5(%arg0: i32, %arg1: i32) -> (i32, i32) {
    %c0_i32 = arith.constant 0 : i32
    return %arg0, %arg1 : i32, i32
  }
}

</mosaic_0001>

<llo_original>
// kernel: tpu_custom_call.1
$region0: #{tpu_custom_call.1}
  #allocation0 [shape = 'u32[]', space=smem, size = 0x4, offset = 0x4, fixed_abs, tag = 'smem constant byte address 0x4 - core index']
  #allocation1 [shape = 'u32[144,128]{1,0:T(1,128)}', space=vmem, size = 0x12000, scoped, tag = 'internal scratch']
  #allocation2 [shape = 'bf16[16,32]{1,0:T(8,128)(2,1)}', space=vmem, size = 0x1000, scoped, tag = 'scratch operand']
  %s0 = inlined_call_operand.hbm [shape: f32[16,32], index: 0, kind: input, shape index: {}]
  %s1 = inlined_call_operand.vmem [shape: f32[1,32], index: 1, kind: input, shape index: {}]
  %s2 = inlined_call_operand.vmem [shape: f32[1,32], index: 2, kind: input, shape index: {}]
  %s3 = inlined_call_operand.hbm [shape: bf16[32,32], index: 3, kind: input, shape index: {}]
  %s4 = inlined_call_operand.vmem [shape: f32[1,32], index: 4, kind: input, shape index: {}]
  %s5 = inlined_call_operand.hbm [shape: f32[16,32], index: 5, kind: output, shape index: {}]
  %s6 = sld [smem:[#allocation0]]
  $region42: #{tpu_custom_call.1} parent=0
    _
  %s8 = ssub.s32 1, %s6
  %s9 = scalar_select 0, %s8, %s6
  $region1: #{tpu_custom_call.1} parent=0
    #allocation3 [shape = 'u8[8192]{0}', space=vmem, size = 0x2000, scoped, tag = 'input window, operand 0, single buffered']
    #allocation4 [shape = 's32[1]{0}', space=sflag, size = 0x4, scoped, tag = 'scoped memory for tpu_custom_call.1']
    #allocation5 [shape = 's32[1]{0}', space=sflag, size = 0x4, scoped, tag = 'scoped memory for tpu_custom_call.1']
    #allocation6 [shape = 'u8[8192]{0}', space=vmem, size = 0x2000, scoped, tag = 'input window, operand 3, single buffered']
    #allocation7 [shape = 's32[1]{0}', space=sflag, size = 0x4, scoped, tag = 'scoped memory for tpu_custom_call.1']
    #allocation8 [shape = 'u8[8192]{0}', space=vmem, size = 0x2000, scoped, tag = 'output window, operand 0, single buffered']
    %10 = vsyncpa [#allocation4], 0
    %11 = vsyncpa [#allocation7], 0
    %12 = vsyncpa [#allocation5], 0
    // Predicated region
    $region2: #{tpu_custom_call.1} parent=1 // pred_check
      _
    $region3: #{tpu_custom_call.1} parent=1 // pred_check_branch
      %14 = sbr.rel (0) target = $region5
    $region4: #{tpu_custom_call.1} parent=1 // pred_region
      %s16 = ssub.s32 256, 256
      %17 = vsyncadd [#allocation4], %s16
      %s18 = sshll.u32 [#allocation3], 4
      %s19 = int_to_ptr.vmem [resolvable:$true] %s18
      %24 = dma.hbm_to_vmem [thread:$0]  %s0, 256, %s19, [#allocation4], 128, 128, 8
    $region5: #{tpu_custom_call.1} parent=1 // pred_fallthru
      _
    // Predicated region
    $region6: #{tpu_custom_call.1} parent=1 // pred_check
      _
    $region7: #{tpu_custom_call.1} parent=1 // pred_check_branch
      %26 = sbr.rel (0) target = $region9
    $region8: #{tpu_custom_call.1} parent=1 // pred_region
      _
    $region9: #{tpu_custom_call.1} parent=1 // pred_fallthru
      _
    // Predicated region
    $region10: #{tpu_custom_call.1} parent=1 // pred_check
      _
    $region11: #{tpu_custom_call.1} parent=1 // pred_check_branch
      %28 = sbr.rel (0) target = $region13
    $region12: #{tpu_custom_call.1} parent=1 // pred_region
      _
    $region13: #{tpu_custom_call.1} parent=1 // pred_fallthru
      _
    // Predicated region
    $region14: #{tpu_custom_call.1} parent=1 // pred_check
      _
    $region15: #{tpu_custom_call.1} parent=1 // pred_check_branch
      %30 = sbr.rel (0) target = $region17
    $region16: #{tpu_custom_call.1} parent=1 // pred_region
      %s32 = ssub.s32 256, 256
      %33 = vsyncadd [#allocation7], %s32
      %s34 = sshll.u32 [#allocation6], 4
      %s35 = int_to_ptr.vmem [resolvable:$true] %s34
      %40 = dma.hbm_to_vmem [thread:$0]  %s3, 256, %s35, [#allocation7], 64, 64, 4
    $region17: #{tpu_custom_call.1} parent=1 // pred_fallthru
      _
    // Predicated region
    $region18: #{tpu_custom_call.1} parent=1 // pred_check
      _
    $region19: #{tpu_custom_call.1} parent=1 // pred_check_branch
      %42 = sbr.rel (0) target = $region21
    $region20: #{tpu_custom_call.1} parent=1 // pred_region
      _
    $region21: #{tpu_custom_call.1} parent=1 // pred_fallthru
      _
    // Predicated region
    $region22: #{tpu_custom_call.1} parent=1 // pred_check
      _
    $region23: #{tpu_custom_call.1} parent=1 // pred_check_branch
      %44 = sbr.rel (0) target = $region25
    $region24: #{tpu_custom_call.1} parent=1 // pred_region
      %45 = dma.done [#allocation4], 256
    $region25: #{tpu_custom_call.1} parent=1 // pred_fallthru
      _
    // Predicated region
    $region26: #{tpu_custom_call.1} parent=1 // pred_check
      _
    $region27: #{tpu_custom_call.1} parent=1 // pred_check_branch
      %47 = sbr.rel (0) target = $region29
    $region28: #{tpu_custom_call.1} parent=1 // pred_region
      %48 = dma.done [#allocation7], 256
    $region29: #{tpu_custom_call.1} parent=1 // pred_fallthru
      _
    %p50 = scmp.eq.s32.totalorder 0, 0
    // Predicated region
    $region30: #{tpu_custom_call.1} parent=1 // pred_check
      %p51 = pneg %p50
    $region31: #{tpu_custom_call.1} parent=1 // pred_check_branch
      %53 = sbr.rel (%p51) target = $region33
    $region32: #{tpu_custom_call.1} parent=1 // pred_region
      %v54 = vld [vmem:[#allocation3] sm:$0xff]
      %v55 = vld [vmem:[#allocation3 + $0x8] sm:$0xff]
      %v56 = vld [vmem:[%s1] sm:$0x1]
      %v57 = vld [vmem:[%s2] sm:$0x1]
      %vm58 = vcmask 261120
      %v59 = vsel %vm58, %v54, 0.0
      %60 = vadd.xlane.f32.xlu0 %v59
      %v61 = vpop.xlane.xlu0 %60
      %v62 = vsel %vm58, %v55, 0.0
      %63 = vadd.xlane.f32.xlu0 %v62
      %v64 = vpop.xlane.xlu0 %63
      %v65 = vmul.f32 %v61, 0.03125
      %v66 = vmul.f32 %v64, 0.03125
      %v67 = vmul.f32 %v54, %v54
      %v68 = vmul.f32 %v55, %v55
      %v69 = vsel %vm58, %v67, 0.0
      %70 = vadd.xlane.f32.xlu0 %v69
      %v71 = vpop.xlane.xlu0 %70
      %v72 = vsel %vm58, %v68, 0.0
      %73 = vadd.xlane.f32.xlu0 %v72
      %v74 = vpop.xlane.xlu0 %73
      %v75 = vmul.f32 %v71, 0.03125
      %v76 = vmul.f32 %v74, 0.03125
      %v77 = vmul.f32 %v65, %v65
      %v78 = vmul.f32 %v66, %v66
      %v79 = vsub.f32 %v75, %v77
      %v80 = vsub.f32 %v76, %v78
      %v81 = vmax.f32 %v79, 0.0
      %v82 = vmax.f32 %v80, 0.0
      %v83 = vadd.f32 %v81, 1e-05
      %v84 = vadd.f32 %v82, 1e-05
      %v85 = vrsqrt.pop %v83
      %v86 = vrsqrt.pop %v84
      %v87 = vsub.f32 %v54, %v65
      %v88 = vsub.f32 %v55, %v66
      %v89 = vmul.f32 %v87, %v85
      %v90 = vmul.f32 %v88, %v86
      %v92 = vlaneseq
      %v93 = vshrl.u32 %v92, 7
      %v94 = vsub.s32 0, %v93
      %v95 = vrot.slane %v56, %v94
      %v97 = vmul.f32 %v89, %v95
      %v98 = vmul.f32 %v90, %v95
      %v100 = vlaneseq
      %v101 = vshrl.u32 %v100, 7
      %v102 = vsub.s32 0, %v101
      %v103 = vrot.slane %v57, %v102
      %v105 = vadd.f32 %v97, %v103
      %v106 = vadd.f32 %v98, %v103
      %v107 = vpack.c.bf16 %v106, %v105
      %v109 = vunpack.c.l.b16 %v107
      %v110 = vunpack.c.h.b16 %v107
      %v111 = vpack.c.b16 %v109, %v109
      %v112 = vpack.c.b16 %v110, %v110
      %vm115 = vcmask 257024
      %116 = vst.msk [vmem:[#allocation2] sm:$0xf] %vm115, %v111
      %117 = vst.msk [vmem:[#allocation2 + $0x4] sm:$0xf] %vm115, %v112
    $region33: #{tpu_custom_call.1} parent=1 // pred_fallthru
      _
    %v118 = vld [vmem:[#allocation2] sm:$0xf]
    %v119 = vld [vmem:[#allocation2 + $0x4] sm:$0xf]
    %v120 = vld [vmem:[#allocation6] sm:$0xf]
    %v121 = vld [vmem:[#allocation6 + $0x4] sm:$0xf]
    %v122 = vld [vmem:[#allocation6 + $0x8] sm:$0xf]
    %v123 = vld [vmem:[#allocation6 + $0xc] sm:$0xf]
    %v124 = vld [vmem:[%s4] sm:$0x1]
    %v126 = vlaneseq
    %v127 = vshrl.u32 %v126, 7
    %v128 = vsub.s32 0, %v127
    %v129 = vrot.slane %v124, %v128
    %v133 = vunpack.c.l.b16 %v118
    %v134 = vunpack.c.l.b16 %v119
    %v135 = vpack.c.b16 %v134, %v133
    %v140 = vunpack.c.l.b16 %v120
    %v141 = vunpack.c.l.b16 %v121
    %v142 = vunpack.c.l.b16 %v122
    %v143 = vunpack.c.l.b16 %v123
    %v144 = vpack.c.b16 %v141, %v140
    %v145 = vpack.c.b16 %v143, %v142
    %vm148 = vcmask 261120
    %v150 = vsel %vm148, %v135, 0
    %152 = vmatprep.subr.bf16.mxu0 0
    %153 = vmatpush1.bf16.msra.mxu0 0
    %154 = vmatprep.subr.bf16.mxu0 0
    %155 = vmatpush1.bf16.msra.mxu0 0
    %156 = vmatprep.subr.bf16.mxu0 0
    %157 = vmatpush1.bf16.msra.mxu0 0
    %158 = vmatprep.subr.bf16.mxu0 0
    %159 = vmatpush1.bf16.msra.mxu0 0
    %160 = vmatprep.subr.bf16.mxu0 0
    %161 = vmatpush1.bf16.msra.mxu0 0
    %162 = vmatprep.subr.bf16.mxu0 0
    %163 = vmatpush1.bf16.msra.mxu0 0
    %164 = vmatprep.subr.bf16.mxu0 0
    %165 = vmatpush1.bf16.msra.mxu0 %v145
    %166 = vmatprep.subr.bf16.mxu0 0
    %167 = vmatpush1.bf16.msra.mxu0 %v144
    %168 = vmatprep.subr.bf16.mxu0 0
    %169 = vmatpush2.bf16.msra.mxu0 0
    %170 = vmatprep.subr.bf16.mxu0 0
    %171 = vmatpush2.bf16.msra.mxu0 0
    %172 = vmatprep.subr.bf16.mxu0 0
    %173 = vmatpush2.bf16.msra.mxu0 0
    %174 = vmatprep.subr.bf16.mxu0 0
    %175 = vmatpush2.bf16.msra.mxu0 0
    %176 = vmatprep.subr.bf16.mxu0 0
    %177 = vmatpush2.bf16.msra.mxu0 0
    %178 = vmatprep.subr.bf16.mxu0 0
    %179 = vmatpush2.bf16.msra.mxu0 0
    %180 = vmatprep.subr.bf16.mxu0 0
    %181 = vmatpush2.bf16.msra.mxu0 0
    %182 = vmatprep.subr.bf16.mxu0 0
    %183 = vmatpush2.bf16.msra.mxu0 0
    %184 = vmatprep.mubr.bf16.mxu0 0
    %185 = vmatmul.mubr.bf16.gmra.mxu0 %v150
    %v186 = vpop.f32.mrf.mxu0
    %v187 = vadd.f32 %v129, %v186
    %v188 = vpop.f32.mrf.mxu0
    %v189 = vpop.f32.mrf.mxu0
    %v190 = vadd.f32 %v129, %v189
    %v191 = vpop.f32.mrf.mxu0
    %192 = vdwg.mxu0
    %193 = vst.msk [vmem:[#allocation8] sm:$0xff] %vm148, %v187
    %194 = vst.msk [vmem:[#allocation8 + $0x8] sm:$0xff] %vm148, %v190
    // Predicated region
    $region34: #{tpu_custom_call.1} parent=1 // pred_check
      _
    $region35: #{tpu_custom_call.1} parent=1 // pred_check_branch
      %196 = sbr.rel (0) target = $region37
    $region36: #{tpu_custom_call.1} parent=1 // pred_region
      %s198 = ssub.s32 256, 256
      %199 = vsyncadd [#allocation5], %s198
      %s200 = sshll.u32 [#allocation8], 4
      %s201 = int_to_ptr.vmem [resolvable:$true] %s200
      %206 = dma.vmem_to_hbm [thread:$0]  %s201, 256, %s5, [#allocation5], 128, 128, 8
    $region37: #{tpu_custom_call.1} parent=1 // pred_fallthru
      _
    // Predicated region
    $region38: #{tpu_custom_call.1} parent=1 // pred_check
      _
    $region39: #{tpu_custom_call.1} parent=1 // pred_check_branch
      %208 = sbr.rel (0) target = $region41
    $region40: #{tpu_custom_call.1} parent=1 // pred_region
      %209 = dma.done [#allocation5], 256
    $region41: #{tpu_custom_call.1} parent=1 // pred_fallthru
      _
    %210 = vsyncpa [#allocation4], 1
    %211 = vsyncpa [#allocation7], 1
    %212 = vsyncpa [#allocation5], 1

</llo_original>
